<compile_context>
chip_gen: v6e
topology: v6e:2x2x1
jax: 0.10.0
libtpu: 0.0.40
codegen_flags: <defaults>
</compile_context>

<pallas_src>
import math

import jax
import jax.numpy as jnp
from jax.experimental import pallas as pl
from jax.experimental.pallas import tpu as pltpu

_LANES = 128
_SUBLANES = 16                    # multiple of 8 (f32) and 16 (bf16 packing)
_EPS = 1e-7
_NUM_CORES = 2                    # leading "parallel" reduce axis (megacore on v7x)
_MAX_LANE_WIDTH = 2048            # cap on lcm-based lane-dense width (16 vregs)
_TARGET_TILE_BYTES = 2 << 20      # ~2 MiB input tile per grid step
_FUSED_LIMIT_BYTES = 4 << 20      # whole-slab fast path threshold (f32-equivalent)
_VMEM_LIMIT = 32 * 1024 * 1024    # safe on v5e/v6e/v7x


def instant_layer_norm(x, gamma, beta, eps=_EPS,
                       max_fused_bytes=_FUSED_LIMIT_BYTES,
                       target_tile_bytes=_TARGET_TILE_BYTES):
    """x: (B, T, C); gamma, beta: (1, 1, C). Returns (B, T, C)."""
    B, T, C = x.shape
    n_elems = B * T * C
    itemsize = jnp.dtype(x.dtype).itemsize
    out_dtype = x.dtype
    inv_n = 1.0 / float(n_elems)

    # ---- layout: lane-dense width = lcm(C, 128) whenever the flat length allows
    lcm = (C * _LANES) // math.gcd(C, _LANES)
    if lcm <= _MAX_LANE_WIDTH and n_elems % lcm == 0:
        width, reps = lcm, lcm // C
        rows = n_elems // width
        x2d = x.reshape(rows, width)          # free reshape, no pad, no copy
    else:
        width, reps = C, 1                    # fallback: still fine if C % 128 == 0
        rows = B * T
        x2d = x.reshape(rows, C)

    # Per-lane affine params (tiny; independent of the reduction, overlaps kernels).
    g_row = jnp.tile(gamma.reshape(-1).astype(jnp.float32), reps).reshape(1, width)
    b_row = jnp.tile(beta.reshape(-1).astype(jnp.float32), reps).reshape(1, width)

    # ======================= fast path: whole slab in VMEM =======================
    if n_elems * 4 <= max_fused_bytes:
        def fused_kernel(x_ref, g_ref, b_ref, o_ref):
            xf = x_ref[...].astype(jnp.float32)
            mean = jnp.sum(xf) * inv_n
            sub = xf - mean
            var = jnp.sum(sub * sub) * inv_n            # exact two-step variance
            inv_std = jax.lax.rsqrt(var + eps)
            o_ref[...] = (sub * (g_ref[...] * inv_std) + b_ref[...]).astype(o_ref.dtype)

        out2d = pl.pallas_call(
            fused_kernel,
            out_shape=jax.ShapeDtypeStruct((rows, width), out_dtype),
            grid_spec=pltpu.PrefetchScalarGridSpec(
                num_scalar_prefetch=0,
                grid=(1,),
                in_specs=[pl.BlockSpec((rows, width), lambda i: (0, 0)),
                          pl.BlockSpec((1, width), lambda i: (0, 0)),
                          pl.BlockSpec((1, width), lambda i: (0, 0))],
                out_specs=pl.BlockSpec((rows, width), lambda i: (0, 0)),
            ),
            compiler_params=pltpu.CompilerParams(
                dimension_semantics=("arbitrary",),
                vmem_limit_bytes=_VMEM_LIMIT),
        )(x2d, g_row, b_row)
        return out2d.reshape(B, T, C)

    # ========================= two-pass tiled pipeline ==========================
    # ---- tile sizing (real itemsize, ~2 MiB input tiles, sublane aligned) ------
    bytes_per_row = width * itemsize
    tm = max(_SUBLANES,
             (target_tile_bytes // bytes_per_row) // _SUBLANES * _SUBLANES)
    if tm >= rows:
        tm = rows                               # single full-extent tile
    num_tiles = pl.cdiv(rows, tm)
    tiles_per_core = pl.cdiv(num_tiles, _NUM_CORES)
    # mask needed iff some grid tile covers rows beyond the true row count
    need_mask = (_NUM_CORES * tiles_per_core * tm) != rows

    # ---- pass 1: per-core one-pass moments (sum, sum-of-squares) --------------
    def reduce_kernel(x_ref, m_ref):
        c = pl.program_id(0)
        i = pl.program_id(1)

        @pl.when(i == 0)
        def _():
            m_ref[...] = jnp.zeros_like(m_ref)

        xf = x_ref[...].astype(jnp.float32)                       # (tm, width)
        if need_mask:
            row0 = (c * tiles_per_core + i) * tm                  # intended start row
            rid = row0 + jax.lax.broadcasted_iota(jnp.int32, (tm, 1), 0)
            xf = jnp.where(rid < rows, xf, 0.0)                   # zero padded rows
        s = jnp.sum(xf, axis=0, keepdims=True)                    # (1, width)
        ss = jnp.sum(xf * xf, axis=0, keepdims=True)              # (1, width)
        m_ref[...] += jnp.concatenate([s, ss], axis=0)[None]      # (1, 2, width)

    def x_map(c, i):
        t = c * tiles_per_core + i
        # clamp fully-OOB tiles onto the last valid block; their rows are masked out
        return (jnp.minimum(t, num_tiles - 1), 0)

    moments = pl.pallas_call(
        reduce_kernel,
        out_shape=jax.ShapeDtypeStruct((_NUM_CORES, 2, width), jnp.float32),
        grid_spec=pltpu.PrefetchScalarGridSpec(
            num_scalar_prefetch=0,
            grid=(_NUM_CORES, tiles_per_core),
            in_specs=[pl.BlockSpec((tm, width), x_map)],
            out_specs=pl.BlockSpec((1, 2, width), lambda c, i: (c, 0, 0)),
        ),
        compiler_params=pltpu.CompilerParams(
            dimension_semantics=("parallel", "arbitrary"),
            vmem_limit_bytes=_VMEM_LIMIT),
    )(x2d)

    # ---- pass 2: normalize; scalar finalize fused into the kernel -------------
    def normalize_kernel(x_ref, m_ref, g_ref, b_ref, o_ref):
        m = m_ref[...]                                            # (cores, 2, width)
        total_sum = jnp.float32(0.0)
        total_sumsq = jnp.float32(0.0)
        for c in range(_NUM_CORES):
            total_sum = total_sum + jnp.sum(m[c, 0:1, :])
            total_sumsq = total_sumsq + jnp.sum(m[c, 1:2, :])
        mean = total_sum * inv_n
        var = jnp.maximum(total_sumsq * inv_n - mean * mean, 0.0)
        inv_std = jax.lax.rsqrt(var + eps)
        a = g_ref[...] * inv_std                                  # (1, width)
        b = b_ref[...] - mean * a
        o_ref[...] = (x_ref[...].astype(jnp.float32) * a + b).astype(o_ref.dtype)

    out2d = pl.pallas_call(
        normalize_kernel,
        out_shape=jax.ShapeDtypeStruct((rows, width), out_dtype),
        grid_spec=pltpu.PrefetchScalarGridSpec(
            num_scalar_prefetch=0,
            grid=(num_tiles,),
            in_specs=[pl.BlockSpec((tm, width), lambda i: (i, 0)),
                      pl.BlockSpec((_NUM_CORES, 2, width), lambda i: (0, 0, 0)),
                      pl.BlockSpec((1, width), lambda i: (0, 0)),
                      pl.BlockSpec((1, width), lambda i: (0, 0))],
            out_specs=pl.BlockSpec((tm, width), lambda i: (i, 0)),
        ),
        compiler_params=pltpu.CompilerParams(
            dimension_semantics=("parallel",),
            vmem_limit_bytes=_VMEM_LIMIT),
    )(x2d, moments, g_row, b_row)

    return out2d.reshape(B, T, C)


def _reference(x, gamma, beta, eps=_EPS):
    x = x.astype(jnp.float32)
    mean = jnp.mean(x)
    sub = x - mean
    var = jnp.mean(jnp.square(sub))
    return sub / jnp.sqrt(var + eps) * gamma + beta


if __name__ == "__main__":
    key = jax.random.PRNGKey(0)
    k1, k2, k3 = jax.random.split(key, 3)

    # Primary small shape consistent with the module: batch=2, seq=8, channels=32.
    B, T, C = 2, 8, 32
    x = jax.random.normal(k1, (B, T, C), dtype=jnp.float32)
    gamma = jnp.ones((1, 1, C), dtype=jnp.float32)   # as in the PyTorch __init__
    beta = jnp.zeros((1, 1, C), dtype=jnp.float32)

    out = instant_layer_norm(x, gamma, beta)
    jax.block_until_ready(out)
    ref = _reference(x, gamma, beta)
    assert out.shape == (B, T, C)
    assert jnp.allclose(out, ref, atol=1e-5, rtol=1e-5), "mismatch (fast path, lane-dense)"

    # Fast path, fallback layout (448 elems not divisible by 128) + nontrivial affine.
    B2, T2, C2 = 2, 7, 32
    x2 = jax.random.normal(k1, (B2, T2, C2), dtype=jnp.float32)
    g2 = 1.0 + 0.1 * jax.random.normal(k2, (1, 1, C2), dtype=jnp.float32)
    b2 = 0.1 * jax.random.normal(k3, (1, 1, C2), dtype=jnp.float32)
    out2 = instant_layer_norm(x2, g2, b2)
    jax.block_until_ready(out2)
    assert jnp.allclose(out2, _reference(x2, g2, b2), atol=1e-5, rtol=1e-5), \
        "mismatch (fast path, fallback layout)"

    # Force the tiled two-pass pipeline with tiny tiles: lane-dense layout,
    # multi-tile accumulation, dual-core reduce grid, tail masking, clamped OOB tile.
    B3, T3, C3 = 4, 72, 32
    x3 = jax.random.normal(k1, (B3, T3, C3), dtype=jnp.float32)
    g3 = 1.0 + 0.1 * jax.random.normal(k2, (1, 1, C3), dtype=jnp.float32)
    b3 = 0.1 * jax.random.normal(k3, (1, 1, C3), dtype=jnp.float32)
    out3 = instant_layer_norm(x3, g3, b3, max_fused_bytes=0, target_tile_bytes=16 * 1024)
    jax.block_until_ready(out3)
    assert jnp.allclose(out3, _reference(x3, g3, b3), atol=1e-5, rtol=1e-5), \
        "mismatch (two-pass, lane-dense)"

    # Two-pass with the fallback (width = C) layout and a fully-masked core-1 tile.
    out4 = instant_layer_norm(x2, g2, b2, max_fused_bytes=0, target_tile_bytes=1024)
    jax.block_until_ready(out4)
    assert jnp.allclose(out4, _reference(x2, g2, b2), atol=1e-5, rtol=1e-5), \
        "mismatch (two-pass, fallback layout)"

    print("KERNEL_OK")
</pallas_src>

<mosaic_0001>
module attributes {stable_mosaic.version = 11 : i64} {
  func.func @fused_kernel(%arg0: i32, %arg1: memref<4x128xf32, #tpu.memory_space<vmem>>, %arg2: memref<1x128xf32, #tpu.memory_space<vmem>>, %arg3: memref<1x128xf32, #tpu.memory_space<vmem>>, %arg4: memref<4x128xf32, #tpu.memory_space<vmem>>) attributes {dimension_semantics = [#tpu.dimension_semantics<arbitrary>], iteration_bounds = array<i64: 1>, scalar_prefetch = 0 : i64, scratch_operands = 0 : i64, tpu.core_type = #tpu.core_type<tc>, window_params = [{pipeline_mode = #tpu.pipeline_mode<synchronous>, transform_indices = @transform_0, window_bounds = array<i64: 4, 128>}, {pipeline_mode = #tpu.pipeline_mode<synchronous>, transform_indices = @transform_1, window_bounds = array<i64: 1, 128>}, {pipeline_mode = #tpu.pipeline_mode<synchronous>, transform_indices = @transform_2, window_bounds = array<i64: 1, 128>}, {pipeline_mode = #tpu.pipeline_mode<synchronous>, transform_indices = @transform_3, window_bounds = array<i64: 4, 128>}]} {
    %c0 = arith.constant 0 : index
    %c0_0 = arith.constant 0 : index
    %0 = vector.load %arg1[%c0, %c0_0] : memref<4x128xf32, #tpu.memory_space<vmem>>, vector<4x128xf32>
    %1 = vector.shape_cast %0 : vector<4x128xf32> to vector<1x4x128xf32>
    %cst = arith.constant dense<0.000000e+00> : vector<1xf32>
    %2 = vector.multi_reduction <add>, %1, %cst [1, 2] : vector<1x4x128xf32> to vector<1xf32>
    %3 = vector.shape_cast %2 : vector<1xf32> to vector<1x1x1xf32>
    %4 = vector.extract %3[0, 0, 0] : f32 from vector<1x1x1xf32>
    %cst_1 = arith.constant 0.001953125 : f32
    %5 = arith.mulf %4, %cst_1 : f32
    %6 = vector.broadcast %5 : f32 to vector<4x128xf32>
    %7 = arith.subf %0, %6 : vector<4x128xf32>
    %8 = arith.mulf %7, %7 : vector<4x128xf32>
    %9 = vector.shape_cast %8 : vector<4x128xf32> to vector<1x4x128xf32>
    %cst_2 = arith.constant dense<0.000000e+00> : vector<1xf32>
    %10 = vector.multi_reduction <add>, %9, %cst_2 [1, 2] : vector<1x4x128xf32> to vector<1xf32>
    %11 = vector.shape_cast %10 : vector<1xf32> to vector<1x1x1xf32>
    %12 = vector.extract %11[0, 0, 0] : f32 from vector<1x1x1xf32>
    %cst_3 = arith.constant 0.001953125 : f32
    %13 = arith.mulf %12, %cst_3 : f32
    %cst_4 = arith.constant 1.000000e-07 : f32
    %14 = arith.addf %13, %cst_4 : f32
    %15 = math.rsqrt %14 : f32
    %c0_5 = arith.constant 0 : index
    %c0_6 = arith.constant 0 : index
    %16 = vector.load %arg2[%c0_5, %c0_6] : memref<1x128xf32, #tpu.memory_space<vmem>>, vector<1x128xf32>
    %17 = vector.broadcast %15 : f32 to vector<1x128xf32>
    %18 = arith.mulf %16, %17 : vector<1x128xf32>
    %19 = vector.broadcast %18 : vector<1x128xf32> to vector<4x128xf32>
    %20 = arith.mulf %7, %19 : vector<4x128xf32>
    %c0_7 = arith.constant 0 : index
    %c0_8 = arith.constant 0 : index
    %21 = vector.load %arg3[%c0_7, %c0_8] : memref<1x128xf32, #tpu.memory_space<vmem>>, vector<1x128xf32>
    %22 = vector.broadcast %21 : vector<1x128xf32> to vector<4x128xf32>
    %23 = arith.addf %20, %22 : vector<4x128xf32>
    %c0_9 = arith.constant 0 : index
    %c0_10 = arith.constant 0 : index
    %24 = vector.load %arg4[%c0_9, %c0_10] : memref<4x128xf32, #tpu.memory_space<vmem>>, vector<4x128xf32>
    tpu.vector_store %arg4[%c0_9, %c0_10], %23 {strides = array<i32>} : memref<4x128xf32, #tpu.memory_space<vmem>>, vector<4x128xf32>,
    return
  }
  func.func @transform_0(%arg0: i32) -> (i32, i32) {
    %c0_i32 = arith.constant 0 : i32
    %c0_i32_0 = arith.constant 0 : i32
    %c0_i32_1 = arith.constant 0 : i32
    return %c0_i32, %c0_i32_0 : i32, i32
  }
  func.func @transform_1(%arg0: i32) -> (i32, i32) {
    %c0_i32 = arith.constant 0 : i32
    %c0_i32_0 = arith.constant 0 : i32
    %c0_i32_1 = arith.constant 0 : i32
    return %c0_i32, %c0_i32_0 : i32, i32
  }
  func.func @transform_2(%arg0: i32) -> (i32, i32) {
    %c0_i32 = arith.constant 0 : i32
    %c0_i32_0 = arith.constant 0 : i32
    %c0_i32_1 = arith.constant 0 : i32
    return %c0_i32, %c0_i32_0 : i32, i32
  }
  func.func @transform_3(%arg0: i32) -> (i32, i32) {
    %c0_i32 = arith.constant 0 : i32
    %c0_i32_0 = arith.constant 0 : i32
    %c0_i32_1 = arith.constant 0 : i32
    return %c0_i32, %c0_i32_0 : i32, i32
  }
}

</mosaic_0001>

<llo_original>
// kernel: tpu_custom_call.1
$region0: #{tpu_custom_call.1}
  #allocation0 [shape = 'u32[]', space=smem, size = 0x4, offset = 0x4, fixed_abs, tag = 'smem constant byte address 0x4 - core index']
  #allocation1 [shape = 'u32[144,128]{1,0:T(1,128)}', space=vmem, size = 0x12000, scoped, tag = 'internal scratch']
  %s0 = inlined_call_operand.hbm [shape: f32[4,128], index: 0, kind: input, shape index: {}]
  %s1 = inlined_call_operand.vmem [shape: f32[1,128], index: 1, kind: input, shape index: {}]
  %s2 = inlined_call_operand.vmem [shape: f32[1,128], index: 2, kind: input, shape index: {}]
  %s3 = inlined_call_operand.hbm [shape: f32[4,128], index: 3, kind: output, shape index: {}]
  %s4 = sld [smem:[#allocation0]]
  $region26: #{tpu_custom_call.1} parent=0
    _
  %s6 = ssub.s32 1, %s4
  %s7 = scalar_select 0, %s6, %s4
  $region1: #{tpu_custom_call.1} parent=0
    #allocation2 [shape = 'u8[2048]{0}', space=vmem, size = 0x800, scoped, tag = 'input window, operand 0, single buffered']
    #allocation3 [shape = 's32[1]{0}', space=sflag, size = 0x4, scoped, tag = 'scoped memory for tpu_custom_call.1']
    #allocation4 [shape = 's32[1]{0}', space=sflag, size = 0x4, scoped, tag = 'scoped memory for tpu_custom_call.1']
    #allocation5 [shape = 'u8[2048]{0}', space=vmem, size = 0x800, scoped, tag = 'output window, operand 0, single buffered']
    %8 = vsyncpa [#allocation3], 0
    %9 = vsyncpa [#allocation4], 0
    // Predicated region
    $region2: #{tpu_custom_call.1} parent=1 // pred_check
      _
    $region3: #{tpu_custom_call.1} parent=1 // pred_check_branch
      %11 = sbr.rel (0) target = $region5
    $region4: #{tpu_custom_call.1} parent=1 // pred_region
      %s13 = ssub.s32 64, 64
      %14 = vsyncadd [#allocation3], %s13
      %s16 = sshll.u32 [#allocation2], 4
      %s17 = int_to_ptr.vmem [resolvable:$true] %s16
      %19 = dma.hbm_to_vmem [thread:$0]  %s0, 64, %s17, [#allocation3]
    $region5: #{tpu_custom_call.1} parent=1 // pred_fallthru
      _
    // Predicated region
    $region6: #{tpu_custom_call.1} parent=1 // pred_check
      _
    $region7: #{tpu_custom_call.1} parent=1 // pred_check_branch
      %21 = sbr.rel (0) target = $region9
    $region8: #{tpu_custom_call.1} parent=1 // pred_region
      _
    $region9: #{tpu_custom_call.1} parent=1 // pred_fallthru
      _
    // Predicated region
    $region10: #{tpu_custom_call.1} parent=1 // pred_check
      _
    $region11: #{tpu_custom_call.1} parent=1 // pred_check_branch
      %23 = sbr.rel (0) target = $region13
    $region12: #{tpu_custom_call.1} parent=1 // pred_region
      _
    $region13: #{tpu_custom_call.1} parent=1 // pred_fallthru
      _
    // Predicated region
    $region14: #{tpu_custom_call.1} parent=1 // pred_check
      _
    $region15: #{tpu_custom_call.1} parent=1 // pred_check_branch
      %25 = sbr.rel (0) target = $region17
    $region16: #{tpu_custom_call.1} parent=1 // pred_region
      %26 = dma.done [#allocation3], 64
    $region17: #{tpu_custom_call.1} parent=1 // pred_fallthru
      _
    %v27 = vld [vmem:[#allocation2] sm:$0xf]
    %vm28 = vcmask 1043456
    %v29 = vsel %vm28, %v27, 0.0
    %30 = vadd.xlane.f32.xlu0 %v29
    %v31 = vpop.xlane.xlu0 %30
    %v32 = vrot.slane %v31, 4
    %v33 = vadd.f32 %v31, %v32
    %v34 = vrot.slane %v33, 2
    %v35 = vadd.f32 %v33, %v34
    %v36 = vrot.slane %v35, 1
    %v37 = vadd.f32 %v35, %v36
    %s38 = vtos %v37
    %s39 = smul.f32 %s38, 0.001953125
    %v40 = vstv %s39
    %v41 = vsub.f32 %v27, %v40
    %v42 = vmul.f32 %v41, %v41
    %v43 = vsel %vm28, %v42, 0.0
    %44 = vadd.xlane.f32.xlu0 %v43
    %v45 = vpop.xlane.xlu0 %44
    %v46 = vrot.slane %v45, 4
    %v47 = vadd.f32 %v45, %v46
    %v48 = vrot.slane %v47, 2
    %v49 = vadd.f32 %v47, %v48
    %v50 = vrot.slane %v49, 1
    %v51 = vadd.f32 %v49, %v50
    %s52 = vtos %v51
    %s53 = smul.f32 %s52, 0.001953125
    %s54 = sadd.f32 %s53, 1e-07
    %v55 = vstv %s54
    %v56 = vrsqrt.pop %v55
    %s57 = vtos %v56
    %v58 = vld [vmem:[%s1] sm:$0x1]
    %v59 = vstv %s57
    %v60 = vmul.f32 %v58, %v59
    %v62 = vlaneseq
    %v63 = vshrl.u32 %v62, 7
    %v64 = vsub.s32 0, %v63
    %v65 = vrot.slane %v60, %v64
    %v67 = vmul.f32 %v41, %v65
    %v68 = vld [vmem:[%s2] sm:$0x1]
    %v70 = vlaneseq
    %v71 = vshrl.u32 %v70, 7
    %v72 = vsub.s32 0, %v71
    %v73 = vrot.slane %v68, %v72
    %v75 = vadd.f32 %v67, %v73
    %76 = vst [vmem:[#allocation5] sm:$0xf] %v75
    // Predicated region
    $region18: #{tpu_custom_call.1} parent=1 // pred_check
      _
    $region19: #{tpu_custom_call.1} parent=1 // pred_check_branch
      %78 = sbr.rel (0) target = $region21
    $region20: #{tpu_custom_call.1} parent=1 // pred_region
      %s80 = ssub.s32 64, 64
      %81 = vsyncadd [#allocation4], %s80
      %s83 = sshll.u32 [#allocation5], 4
      %s84 = int_to_ptr.vmem [resolvable:$true] %s83
      %86 = dma.vmem_to_hbm [thread:$0]  %s84, 64, %s3, [#allocation4]
    $region21: #{tpu_custom_call.1} parent=1 // pred_fallthru
      _
    // Predicated region
    $region22: #{tpu_custom_call.1} parent=1 // pred_check
      _
    $region23: #{tpu_custom_call.1} parent=1 // pred_check_branch
      %88 = sbr.rel (0) target = $region25
    $region24: #{tpu_custom_call.1} parent=1 // pred_region
      %89 = dma.done [#allocation4], 64
    $region25: #{tpu_custom_call.1} parent=1 // pred_fallthru
      _
    %90 = vsyncpa [#allocation3], 1
    %91 = vsyncpa [#allocation4], 1

</llo_original>
